<compile_context>
chip_gen: v7x
topology: tpu7x:2x2x1
jax: 0.10.0
libtpu: 0.0.40
codegen_flags: <defaults>
</compile_context>

<pallas_src>
import jax
import jax.numpy as jnp
from jax import lax
from jax.experimental import pallas as pl
from jax.experimental.pallas import tpu as pltpu

_EPS = 1e-12            # matches torch.nn.functional.normalize default eps
_EPS2 = _EPS * _EPS     # 1e-24, still a normal f32
_LANES_MAX = 2048       # lanes (C) per block, multiple of 128
_TR_MAX = 128           # sublane rows (TR) per block, multiple of 8


def _rotmat_kernel(in_ref, out_ref):
    # in_ref : (6, TR, C) f32, out_ref : (9, TR, C) f32
    a0, a1, a2 = in_ref[0], in_ref[1], in_ref[2]          # column 0 of (3,2)
    c0, c1, c2 = in_ref[3], in_ref[4], in_ref[5]          # column 1 of (3,2)

    # b1 = normalize(a): a * rsqrt(max(|a|^2, eps^2))  (EUP rsqrt, VPU muls)
    inv_a = lax.rsqrt(jnp.maximum(a0 * a0 + a1 * a1 + a2 * a2, _EPS2))
    b1_0 = a0 * inv_a
    b1_1 = a1 * inv_a
    b1_2 = a2 * inv_a

    # dot = <b1, b>;  b2 = normalize(b - dot * b1)
    dot = b1_0 * c0 + b1_1 * c1 + b1_2 * c2
    u0 = c0 - dot * b1_0
    u1 = c1 - dot * b1_1
    u2 = c2 - dot * b1_2
    inv_u = lax.rsqrt(jnp.maximum(u0 * u0 + u1 * u1 + u2 * u2, _EPS2))
    b2_0 = u0 * inv_u
    b2_1 = u1 * inv_u
    b2_2 = u2 * inv_u

    # Direct per-plane stores (no concatenate / sublane shuffling).
    out_ref[0] = b1_0
    out_ref[1] = b1_1
    out_ref[2] = b1_2
    out_ref[3] = b2_0
    out_ref[4] = b2_1
    out_ref[5] = b2_2
    # b3 = cross(b1, b2)
    out_ref[6] = b1_1 * b2_2 - b1_2 * b2_1
    out_ref[7] = b1_2 * b2_0 - b1_0 * b2_2
    out_ref[8] = b1_0 * b2_1 - b1_1 * b2_0


def _round_up(v, m):
    return ((v + m - 1) // m) * m


def rotmat_decoder(x):
    """Pallas implementation of RotMatDecoder.forward. Returns (N, 3, 3) f32."""
    xr = jnp.reshape(x, (-1, 3, 2)).astype(jnp.float32)    # x.view(-1, 3, 2)
    n = xr.shape[0]

    # (N, 3, 2) -> (2, 3, N) -> (6, N): rows a0,a1,a2,b0,b1,b2, N on lanes.
    xk = jnp.transpose(xr, (2, 1, 0)).reshape(6, n)

    # Adaptive lane-dense tiling: fold N into an (R, C) plane.
    n128 = _round_up(n, 128)
    C = min(_LANES_MAX, n128)                 # multiple of 128
    R = -(-n // C)                            # ceil(n / C)
    if R <= _TR_MAX:
        TR = R                                # full-extent block (always legal)
    else:
        TR = _TR_MAX                          # multiple of 8
        R = _round_up(R, TR)
    n_total = R * C

    xk = jnp.pad(xk, ((0, 0), (0, n_total - n)))           # zero pad is harmless
    xk = xk.reshape(6, R, C)

    out = pl.pallas_call(
        _rotmat_kernel,
        out_shape=jax.ShapeDtypeStruct((9, R, C), jnp.float32),
        grid_spec=pltpu.PrefetchScalarGridSpec(
            num_scalar_prefetch=0,
            grid=(R // TR,),
            in_specs=[pl.BlockSpec((6, TR, C), lambda i: (0, i, 0))],
            out_specs=pl.BlockSpec((9, TR, C), lambda i: (0, i, 0)),
        ),
        compiler_params=pltpu.CompilerParams(
            dimension_semantics=("parallel",),
            # Largest block: (6+9)*128*2048*4B double-buffered ~= 31.5 MiB.
            # 48 MiB headroom is safe on v7x (64 MiB VMEM) and on v5e/v6e.
            vmem_limit_bytes=48 * 1024 * 1024,
        ),
    )(xk)

    out = out.reshape(9, n_total)[:, :n]
    # (9, N) -> (3[col j], 3[row i], N) -> (N, 3[row i], 3[col j])
    return jnp.transpose(out.reshape(3, 3, n), (2, 1, 0))


def _rotmat_reference(x):
    """Pure-JAX reference mirroring the PyTorch forward exactly."""
    xr = jnp.reshape(x, (-1, 3, 2)).astype(jnp.float32)
    a = xr[:, :, 0]
    b = xr[:, :, 1]
    b1 = a / jnp.maximum(jnp.linalg.norm(a, axis=1, keepdims=True), _EPS)
    dot = jnp.sum(b1 * b, axis=1, keepdims=True)
    u2 = b - dot * b1
    b2 = u2 / jnp.maximum(jnp.linalg.norm(u2, axis=1, keepdims=True), _EPS)
    b3 = jnp.cross(b1, b2, axis=1)
    return jnp.stack([b1, b2, b3], axis=-1)


if __name__ == "__main__":
    key = jax.random.PRNGKey(0)
    # Total elements must be divisible by 6 (the module views as (-1, 3, 2)).
    x = jax.random.normal(key, (4, 4, 6, 16), dtype=jnp.float32)  # -> N = 256

    out = rotmat_decoder(x)
    out = jax.block_until_ready(out)

    ref = _rotmat_reference(x)
    assert out.shape == ref.shape == (256, 3, 3), (out.shape, ref.shape)
    assert jnp.allclose(out, ref, atol=1e-5, rtol=1e-5), "mismatch vs reference"

    print("KERNEL_OK")
</pallas_src>

<mosaic_0001>
module attributes {stable_mosaic.version = 11 : i64} {
  func.func @_rotmat_kernel(%arg0: i32, %arg1: memref<6x1x256xf32, #tpu.memory_space<vmem>>, %arg2: memref<9x1x256xf32, #tpu.memory_space<vmem>>) attributes {dimension_semantics = [#tpu.dimension_semantics<parallel>], iteration_bounds = array<i64: 1>, scalar_prefetch = 0 : i64, scratch_operands = 0 : i64, tpu.core_type = #tpu.core_type<tc>, window_params = [{transform_indices = @transform_0, window_bounds = array<i64: 6, 1, 256>}, {transform_indices = @transform_1, window_bounds = array<i64: 9, 1, 256>}]} {
    %c0 = arith.constant 0 : index
    %c0_0 = arith.constant 0 : index
    %c0_1 = arith.constant 0 : index
    %0 = vector.load %arg1[%c0, %c0_0, %c0_1] : memref<6x1x256xf32, #tpu.memory_space<vmem>>, vector<1x1x256xf32>
    %1 = vector.shape_cast %0 : vector<1x1x256xf32> to vector<1x256xf32>
    %c1 = arith.constant 1 : index
    %c0_2 = arith.constant 0 : index
    %c0_3 = arith.constant 0 : index
    %2 = vector.load %arg1[%c1, %c0_2, %c0_3] : memref<6x1x256xf32, #tpu.memory_space<vmem>>, vector<1x1x256xf32>
    %3 = vector.shape_cast %2 : vector<1x1x256xf32> to vector<1x256xf32>
    %c2 = arith.constant 2 : index
    %c0_4 = arith.constant 0 : index
    %c0_5 = arith.constant 0 : index
    %4 = vector.load %arg1[%c2, %c0_4, %c0_5] : memref<6x1x256xf32, #tpu.memory_space<vmem>>, vector<1x1x256xf32>
    %5 = vector.shape_cast %4 : vector<1x1x256xf32> to vector<1x256xf32>
    %c3 = arith.constant 3 : index
    %c0_6 = arith.constant 0 : index
    %c0_7 = arith.constant 0 : index
    %6 = vector.load %arg1[%c3, %c0_6, %c0_7] : memref<6x1x256xf32, #tpu.memory_space<vmem>>, vector<1x1x256xf32>
    %7 = vector.shape_cast %6 : vector<1x1x256xf32> to vector<1x256xf32>
    %c4 = arith.constant 4 : index
    %c0_8 = arith.constant 0 : index
    %c0_9 = arith.constant 0 : index
    %8 = vector.load %arg1[%c4, %c0_8, %c0_9] : memref<6x1x256xf32, #tpu.memory_space<vmem>>, vector<1x1x256xf32>
    %9 = vector.shape_cast %8 : vector<1x1x256xf32> to vector<1x256xf32>
    %c5 = arith.constant 5 : index
    %c0_10 = arith.constant 0 : index
    %c0_11 = arith.constant 0 : index
    %10 = vector.load %arg1[%c5, %c0_10, %c0_11] : memref<6x1x256xf32, #tpu.memory_space<vmem>>, vector<1x1x256xf32>
    %11 = vector.shape_cast %10 : vector<1x1x256xf32> to vector<1x256xf32>
    %12 = arith.mulf %1, %1 : vector<1x256xf32>
    %13 = arith.mulf %3, %3 : vector<1x256xf32>
    %14 = arith.addf %12, %13 : vector<1x256xf32>
    %15 = arith.mulf %5, %5 : vector<1x256xf32>
    %16 = arith.addf %14, %15 : vector<1x256xf32>
    %cst = arith.constant 1.000000e-24 : f32
    %17 = vector.broadcast %cst : f32 to vector<1x256xf32>
    %18 = arith.maximumf %16, %17 : vector<1x256xf32>
    %19 = math.rsqrt %18 : vector<1x256xf32>
    %20 = arith.mulf %1, %19 : vector<1x256xf32>
    %21 = arith.mulf %3, %19 : vector<1x256xf32>
    %22 = arith.mulf %5, %19 : vector<1x256xf32>
    %23 = arith.mulf %20, %7 : vector<1x256xf32>
    %24 = arith.mulf %21, %9 : vector<1x256xf32>
    %25 = arith.addf %23, %24 : vector<1x256xf32>
    %26 = arith.mulf %22, %11 : vector<1x256xf32>
    %27 = arith.addf %25, %26 : vector<1x256xf32>
    %28 = arith.mulf %27, %20 : vector<1x256xf32>
    %29 = arith.subf %7, %28 : vector<1x256xf32>
    %30 = arith.mulf %27, %21 : vector<1x256xf32>
    %31 = arith.subf %9, %30 : vector<1x256xf32>
    %32 = arith.mulf %27, %22 : vector<1x256xf32>
    %33 = arith.subf %11, %32 : vector<1x256xf32>
    %34 = arith.mulf %29, %29 : vector<1x256xf32>
    %35 = arith.mulf %31, %31 : vector<1x256xf32>
    %36 = arith.addf %34, %35 : vector<1x256xf32>
    %37 = arith.mulf %33, %33 : vector<1x256xf32>
    %38 = arith.addf %36, %37 : vector<1x256xf32>
    %cst_12 = arith.constant 1.000000e-24 : f32
    %39 = vector.broadcast %cst_12 : f32 to vector<1x256xf32>
    %40 = arith.maximumf %38, %39 : vector<1x256xf32>
    %41 = math.rsqrt %40 : vector<1x256xf32>
    %42 = arith.mulf %29, %41 : vector<1x256xf32>
    %43 = arith.mulf %31, %41 : vector<1x256xf32>
    %44 = arith.mulf %33, %41 : vector<1x256xf32>
    %c0_13 = arith.constant 0 : index
    %c0_14 = arith.constant 0 : index
    %c0_15 = arith.constant 0 : index
    %45 = vector.load %arg2[%c0_13, %c0_14, %c0_15] : memref<9x1x256xf32, #tpu.memory_space<vmem>>, vector<1x1x256xf32>
    %46 = vector.shape_cast %45 : vector<1x1x256xf32> to vector<1x256xf32>
    %47 = vector.shape_cast %20 : vector<1x256xf32> to vector<1x1x256xf32>
    tpu.vector_store %arg2[%c0_13, %c0_14, %c0_15], %47 {strides = array<i32>} : memref<9x1x256xf32, #tpu.memory_space<vmem>>, vector<1x1x256xf32>,
    %c1_16 = arith.constant 1 : index
    %c0_17 = arith.constant 0 : index
    %c0_18 = arith.constant 0 : index
    %48 = vector.load %arg2[%c1_16, %c0_17, %c0_18] : memref<9x1x256xf32, #tpu.memory_space<vmem>>, vector<1x1x256xf32>
    %49 = vector.shape_cast %48 : vector<1x1x256xf32> to vector<1x256xf32>
    %50 = vector.shape_cast %21 : vector<1x256xf32> to vector<1x1x256xf32>
    tpu.vector_store %arg2[%c1_16, %c0_17, %c0_18], %50 {strides = array<i32>} : memref<9x1x256xf32, #tpu.memory_space<vmem>>, vector<1x1x256xf32>,
    %c2_19 = arith.constant 2 : index
    %c0_20 = arith.constant 0 : index
    %c0_21 = arith.constant 0 : index
    %51 = vector.load %arg2[%c2_19, %c0_20, %c0_21] : memref<9x1x256xf32, #tpu.memory_space<vmem>>, vector<1x1x256xf32>
    %52 = vector.shape_cast %51 : vector<1x1x256xf32> to vector<1x256xf32>
    %53 = vector.shape_cast %22 : vector<1x256xf32> to vector<1x1x256xf32>
    tpu.vector_store %arg2[%c2_19, %c0_20, %c0_21], %53 {strides = array<i32>} : memref<9x1x256xf32, #tpu.memory_space<vmem>>, vector<1x1x256xf32>,
    %c3_22 = arith.constant 3 : index
    %c0_23 = arith.constant 0 : index
    %c0_24 = arith.constant 0 : index
    %54 = vector.load %arg2[%c3_22, %c0_23, %c0_24] : memref<9x1x256xf32, #tpu.memory_space<vmem>>, vector<1x1x256xf32>
    %55 = vector.shape_cast %54 : vector<1x1x256xf32> to vector<1x256xf32>
    %56 = vector.shape_cast %42 : vector<1x256xf32> to vector<1x1x256xf32>
    tpu.vector_store %arg2[%c3_22, %c0_23, %c0_24], %56 {strides = array<i32>} : memref<9x1x256xf32, #tpu.memory_space<vmem>>, vector<1x1x256xf32>,
    %c4_25 = arith.constant 4 : index
    %c0_26 = arith.constant 0 : index
    %c0_27 = arith.constant 0 : index
    %57 = vector.load %arg2[%c4_25, %c0_26, %c0_27] : memref<9x1x256xf32, #tpu.memory_space<vmem>>, vector<1x1x256xf32>
    %58 = vector.shape_cast %57 : vector<1x1x256xf32> to vector<1x256xf32>
    %59 = vector.shape_cast %43 : vector<1x256xf32> to vector<1x1x256xf32>
    tpu.vector_store %arg2[%c4_25, %c0_26, %c0_27], %59 {strides = array<i32>} : memref<9x1x256xf32, #tpu.memory_space<vmem>>, vector<1x1x256xf32>,
    %c5_28 = arith.constant 5 : index
    %c0_29 = arith.constant 0 : index
    %c0_30 = arith.constant 0 : index
    %60 = vector.load %arg2[%c5_28, %c0_29, %c0_30] : memref<9x1x256xf32, #tpu.memory_space<vmem>>, vector<1x1x256xf32>
    %61 = vector.shape_cast %60 : vector<1x1x256xf32> to vector<1x256xf32>
    %62 = vector.shape_cast %44 : vector<1x256xf32> to vector<1x1x256xf32>
    tpu.vector_store %arg2[%c5_28, %c0_29, %c0_30], %62 {strides = array<i32>} : memref<9x1x256xf32, #tpu.memory_space<vmem>>, vector<1x1x256xf32>,
    %63 = arith.mulf %21, %44 : vector<1x256xf32>
    %64 = arith.mulf %22, %43 : vector<1x256xf32>
    %65 = arith.subf %63, %64 : vector<1x256xf32>
    %c6 = arith.constant 6 : index
    %c0_31 = arith.constant 0 : index
    %c0_32 = arith.constant 0 : index
    %66 = vector.load %arg2[%c6, %c0_31, %c0_32] : memref<9x1x256xf32, #tpu.memory_space<vmem>>, vector<1x1x256xf32>
    %67 = vector.shape_cast %66 : vector<1x1x256xf32> to vector<1x256xf32>
    %68 = vector.shape_cast %65 : vector<1x256xf32> to vector<1x1x256xf32>
    tpu.vector_store %arg2[%c6, %c0_31, %c0_32], %68 {strides = array<i32>} : memref<9x1x256xf32, #tpu.memory_space<vmem>>, vector<1x1x256xf32>,
    %69 = arith.mulf %22, %42 : vector<1x256xf32>
    %70 = arith.mulf %20, %44 : vector<1x256xf32>
    %71 = arith.subf %69, %70 : vector<1x256xf32>
    %c7 = arith.constant 7 : index
    %c0_33 = arith.constant 0 : index
    %c0_34 = arith.constant 0 : index
    %72 = vector.load %arg2[%c7, %c0_33, %c0_34] : memref<9x1x256xf32, #tpu.memory_space<vmem>>, vector<1x1x256xf32>
    %73 = vector.shape_cast %72 : vector<1x1x256xf32> to vector<1x256xf32>
    %74 = vector.shape_cast %71 : vector<1x256xf32> to vector<1x1x256xf32>
    tpu.vector_store %arg2[%c7, %c0_33, %c0_34], %74 {strides = array<i32>} : memref<9x1x256xf32, #tpu.memory_space<vmem>>, vector<1x1x256xf32>,
    %75 = arith.mulf %20, %43 : vector<1x256xf32>
    %76 = arith.mulf %21, %42 : vector<1x256xf32>
    %77 = arith.subf %75, %76 : vector<1x256xf32>
    %c8 = arith.constant 8 : index
    %c0_35 = arith.constant 0 : index
    %c0_36 = arith.constant 0 : index
    %78 = vector.load %arg2[%c8, %c0_35, %c0_36] : memref<9x1x256xf32, #tpu.memory_space<vmem>>, vector<1x1x256xf32>
    %79 = vector.shape_cast %78 : vector<1x1x256xf32> to vector<1x256xf32>
    %80 = vector.shape_cast %77 : vector<1x256xf32> to vector<1x1x256xf32>
    tpu.vector_store %arg2[%c8, %c0_35, %c0_36], %80 {strides = array<i32>} : memref<9x1x256xf32, #tpu.memory_space<vmem>>, vector<1x1x256xf32>,
    return
  }
  func.func @transform_0(%arg0: i32) -> (i32, i32, i32) {
    %c0_i32 = arith.constant 0 : i32
    %c0_i32_0 = arith.constant 0 : i32
    %c0_i32_1 = arith.constant 0 : i32
    return %c0_i32, %arg0, %c0_i32_0 : i32, i32, i32
  }
  func.func @transform_1(%arg0: i32) -> (i32, i32, i32) {
    %c0_i32 = arith.constant 0 : i32
    %c0_i32_0 = arith.constant 0 : i32
    %c0_i32_1 = arith.constant 0 : i32
    return %c0_i32, %arg0, %c0_i32_0 : i32, i32, i32
  }
}

</mosaic_0001>

<llo_original>
// kernel: tpu_custom_call.1
$region0: #{tpu_custom_call.1}
  #allocation0 [shape = 'u32[]', space=smem, size = 0x4, offset = 0x4, fixed_abs, tag = 'smem constant byte address 0x4 - core index']
  #allocation1 [shape = 'u32[144,128]{1,0:T(1,128)}', space=vmem, size = 0x12000, scoped, tag = 'internal scratch']
  %s0 = inlined_call_operand.hbm [shape: f32[6,1,256], index: 0, kind: input, shape index: {}]
  %s1 = inlined_call_operand.hbm [shape: f32[9,1,256], index: 1, kind: output, shape index: {}]
  %s2 = sld [smem:[#allocation0]]
  $region18: #{tpu_custom_call.1} parent=0
    _
  %s4 = ssub.s32 1, %s2
  %s5 = scalar_select 0, %s4, %s2
  $region1: #{tpu_custom_call.1} parent=0
    #allocation2 [shape = 'u8[6144]{0}', space=vmem, size = 0x1800, scoped, tag = 'input window, operand 0, single buffered']
    #allocation3 [shape = 's32[1]{0}', space=sflag, size = 0x4, scoped, tag = 'scoped memory for tpu_custom_call.1']
    #allocation4 [shape = 's32[1]{0}', space=sflag, size = 0x4, scoped, tag = 'scoped memory for tpu_custom_call.1']
    #allocation5 [shape = 'u8[9216]{0}', space=vmem, size = 0x2400, scoped, tag = 'output window, operand 0, single buffered']
    %6 = vsyncpa [#allocation3], 0
    %7 = vsyncpa [#allocation4], 0
    // Predicated region
    $region2: #{tpu_custom_call.1} parent=1 // pred_check
      _
    $region3: #{tpu_custom_call.1} parent=1 // pred_check_branch
      %9 = sbr.rel (0) target = $region5
    $region4: #{tpu_custom_call.1} parent=1 // pred_region
      %s11 = ssub.s32 192, 192
      %12 = vsyncadd [#allocation3], %s11
      %s13 = sshll.u32 [#allocation2], 4
      %s14 = int_to_ptr.vmem [resolvable:$true] %s13
      %19 = dma.hbm_to_vmem [thread:$0]  %s0, 192, %s14, [#allocation3], 32, 32, 2
    $region5: #{tpu_custom_call.1} parent=1 // pred_fallthru
      _
    // Predicated region
    $region6: #{tpu_custom_call.1} parent=1 // pred_check
      _
    $region7: #{tpu_custom_call.1} parent=1 // pred_check_branch
      %21 = sbr.rel (0) target = $region9
    $region8: #{tpu_custom_call.1} parent=1 // pred_region
      %22 = dma.done [#allocation3], 192
    $region9: #{tpu_custom_call.1} parent=1 // pred_fallthru
      _
    %v23 = vld [vmem:[#allocation2] sm:$0x3]
    %s24 = scalar_lea.vmem [#allocation2], 2
    %v25 = vld [vmem:[%s24] sm:$0x3]
    %s26 = scalar_lea.vmem [#allocation2], 4
    %v27 = vld [vmem:[%s26] sm:$0x3]
    %s28 = scalar_lea.vmem [#allocation2], 6
    %v29 = vld [vmem:[%s28] sm:$0x3]
    %s30 = scalar_lea.vmem [#allocation2], 8
    %v31 = vld [vmem:[%s30] sm:$0x3]
    %s32 = scalar_lea.vmem [#allocation2], 10
    %v33 = vld [vmem:[%s32] sm:$0x3]
    %v34 = vmul.f32 %v23, %v23
    %v35 = vmul.f32 %v25, %v25
    %v36 = vadd.f32 %v34, %v35
    %v37 = vmul.f32 %v27, %v27
    %v38 = vadd.f32 %v36, %v37
    %v39 = vmax.f32 %v38, 1e-24
    %v40 = vrsqrt.pop %v39
    %v41 = vmul.f32 %v23, %v40
    %v42 = vmul.f32 %v25, %v40
    %v43 = vmul.f32 %v27, %v40
    %v44 = vmul.f32 %v41, %v29
    %v45 = vmul.f32 %v42, %v31
    %v46 = vadd.f32 %v44, %v45
    %v47 = vmul.f32 %v43, %v33
    %v48 = vadd.f32 %v46, %v47
    %v49 = vmul.f32 %v48, %v41
    %v50 = vsub.f32 %v29, %v49
    %v51 = vmul.f32 %v48, %v42
    %v52 = vsub.f32 %v31, %v51
    %v53 = vmul.f32 %v48, %v43
    %v54 = vsub.f32 %v33, %v53
    %v55 = vmul.f32 %v50, %v50
    %v56 = vmul.f32 %v52, %v52
    %v57 = vadd.f32 %v55, %v56
    %v58 = vmul.f32 %v54, %v54
    %v59 = vadd.f32 %v57, %v58
    %v60 = vmax.f32 %v59, 1e-24
    %v61 = vrsqrt.pop %v60
    %v62 = vmul.f32 %v50, %v61
    %v63 = vmul.f32 %v52, %v61
    %v64 = vmul.f32 %v54, %v61
    %v65 = vlaneseq
    %vm66 = vcmp.ge.s32.totalorder %v65, 0
    %vm67 = vcmp.lt.s32.totalorder %v65, 256
    %vm68 = vmand %vm66, %vm67
    %69 = vst.msk [vmem:[#allocation5] sm:$0x3] %vm68, %v41
    %s70 = scalar_lea.vmem [#allocation5], 2
    %71 = vst.msk [vmem:[%s70] sm:$0x3] %vm68, %v42
    %s72 = scalar_lea.vmem [#allocation5], 4
    %73 = vst.msk [vmem:[%s72] sm:$0x3] %vm68, %v43
    %s74 = scalar_lea.vmem [#allocation5], 6
    %75 = vst.msk [vmem:[%s74] sm:$0x3] %vm68, %v62
    %s76 = scalar_lea.vmem [#allocation5], 8
    %77 = vst.msk [vmem:[%s76] sm:$0x3] %vm68, %v63
    %s78 = scalar_lea.vmem [#allocation5], 10
    %79 = vst.msk [vmem:[%s78] sm:$0x3] %vm68, %v64
    %v80 = vmul.f32 %v42, %v64
    %v81 = vmul.f32 %v43, %v63
    %v82 = vsub.f32 %v80, %v81
    %s83 = scalar_lea.vmem [#allocation5], 12
    %84 = vst.msk [vmem:[%s83] sm:$0x3] %vm68, %v82
    %v85 = vmul.f32 %v43, %v62
    %v86 = vmul.f32 %v41, %v64
    %v87 = vsub.f32 %v85, %v86
    %s88 = scalar_lea.vmem [#allocation5], 14
    %89 = vst.msk [vmem:[%s88] sm:$0x3] %vm68, %v87
    %v90 = vmul.f32 %v41, %v63
    %v91 = vmul.f32 %v42, %v62
    %v92 = vsub.f32 %v90, %v91
    %s93 = scalar_lea.vmem [#allocation5], 16
    %94 = vst.msk [vmem:[%s93] sm:$0x3] %vm68, %v92
    // Predicated region
    $region10: #{tpu_custom_call.1} parent=1 // pred_check
      _
    $region11: #{tpu_custom_call.1} parent=1 // pred_check_branch
      %96 = sbr.rel (0) target = $region13
    $region12: #{tpu_custom_call.1} parent=1 // pred_region
      %s98 = ssub.s32 288, 288
      %99 = vsyncadd [#allocation4], %s98
      %s100 = sshll.u32 [#allocation5], 4
      %s101 = int_to_ptr.vmem [resolvable:$true] %s100
      %106 = dma.vmem_to_hbm [thread:$0]  %s101, 288, %s1, [#allocation4], 32, 32, 2
    $region13: #{tpu_custom_call.1} parent=1 // pred_fallthru
      _
    // Predicated region
    $region14: #{tpu_custom_call.1} parent=1 // pred_check
      _
    $region15: #{tpu_custom_call.1} parent=1 // pred_check_branch
      %108 = sbr.rel (0) target = $region17
    $region16: #{tpu_custom_call.1} parent=1 // pred_region
      %109 = dma.done [#allocation4], 288
    $region17: #{tpu_custom_call.1} parent=1 // pred_fallthru
      _
    %110 = vsyncpa [#allocation3], 1
    %111 = vsyncpa [#allocation4], 1

</llo_original>
